<compile_context>
chip_gen: v5e
topology: v5e:2x2
jax: 0.10.0
libtpu: 0.0.40
codegen_flags: <defaults>
</compile_context>

<pallas_src>
import functools

import jax
import jax.numpy as jnp
from jax import lax
from jax.experimental import pallas as pl
from jax.experimental.pallas import tpu as pltpu

EPSILON = 1e-12


def _round_down(x, m):
    return (x // m) * m


def _round_up(x, m):
    return ((x + m - 1) // m) * m


def _vmem_config():
    """(vmem_limit_bytes, tile_budget_bytes), generation-aware."""
    cap = 64 * 1024 * 1024
    try:
        info = pltpu.get_tpu_info()
        cap = int(getattr(info, "vmem_capacity_bytes", cap))
    except Exception:  # pragma: no cover - CPU / interpret fallbacks
        pass
    if cap >= 100 * 1024 * 1024:          # v5e / v6e: 128 MiB physical
        return 80 * 1024 * 1024, 56 * 1024 * 1024
    return 48 * 1024 * 1024, 32 * 1024 * 1024   # v7x: 64 MiB per TensorCore


def _cosine_loss_kernel(x1_ref, x2_ref, seg_ref, o_ref, *, tile_rows, valid_rows):
    """One row-tile: per-row cosine loss, summed into a lane-dense partial block.

    x1_ref/x2_ref: (tile_rows, de) native-dtype tiles (de = groups*d, rows
    lane-packed when d < 128).  seg_ref: (de, groups) resident 0/1 matrix.
    o_ref: (1, 8, 128) per-block partial-sum output.
    """
    x1 = x1_ref[...].astype(jnp.float32)
    x2 = x2_ref[...].astype(jnp.float32)
    seg = seg_ref[...]

    prod = x1 * x2
    sq1 = x1 * x1
    sq2 = x2 * x2

    # Segmented (or plain, when groups==1) lane reduction on the idle MXU.
    dot = jnp.dot(prod, seg, preferred_element_type=jnp.float32,
                  precision=lax.Precision.HIGHEST)          # (tile_rows, groups)
    n1s = jnp.dot(sq1, seg, preferred_element_type=jnp.float32,
                  precision=lax.Precision.HIGHEST)
    n2s = jnp.dot(sq2, seg, preferred_element_type=jnp.float32,
                  precision=lax.Precision.HIGHEST)

    sim = dot / (jnp.sqrt(n1s) * jnp.sqrt(n2s) + EPSILON)
    per_row = 1.0 - sim                                       # (tile_rows, groups)

    # Only the last block can contain garbage (OOB) rows; the mask is compiled
    # in only when the packed row count doesn't divide evenly.  Keep it a
    # select (jnp.where), never multiplicative: garbage may be NaN/Inf.
    if valid_rows % tile_rows != 0:
        i = pl.program_id(0)
        row_ids = i * tile_rows + lax.broadcasted_iota(jnp.int32, per_row.shape, 0)
        per_row = jnp.where(row_ids < valid_rows, per_row, 0.0)

    partial = jnp.sum(per_row)
    # Lane-dense, unmasked full-tile store of the per-block partial sum.
    o_ref[...] = jnp.full(o_ref.shape, partial, dtype=o_ref.dtype)


def cosine_embedding_loss(x1, x2, *, max_tile_rows=4096):
    """Pallas equivalent of CosineEmbeddingLoss(margin=0.0).forward(x1, x2)."""
    assert x1.shape == x2.shape, "x1 and x2 must have the same shape"
    d = x1.shape[-1]
    x1f = x1.reshape(-1, d)
    x2f = x2.reshape(-1, d)
    total_rows = x1f.shape[0]
    itemsize = jnp.dtype(x1.dtype).itemsize

    # --- Lane packing for small hidden sizes: g rows per 128-lane register ---
    groups = 1
    rem_rows = 0
    if d < 128 and 128 % d == 0:
        g = 128 // d
        if total_rows >= g:
            groups = g
            rem_rows = total_rows % g          # leftover rows handled in JAX
    main_rows = total_rows - rem_rows

    # Leftover (< groups) rows: plain-JAX tail so the kernel path stays fully
    # lane-packed instead of falling back to a lane-wasteful de=d layout.
    rem_sum = jnp.float32(0.0)
    if rem_rows > 0:
        r1 = x1f[main_rows:].astype(jnp.float32)
        r2 = x2f[main_rows:].astype(jnp.float32)
        sim_r = jnp.sum(r1 * r2, axis=-1) / (
            jnp.linalg.norm(r1, axis=-1) * jnp.linalg.norm(r2, axis=-1) + EPSILON
        )
        rem_sum = jnp.sum(1.0 - sim_r)

    de = groups * d                        # effective (lane) width per packed row
    re = main_rows // groups               # packed row count seen by the kernel
    x1m = x1f[:main_rows].reshape(re, de)  # contiguous reshape: no HBM copy
    x2m = x2f[:main_rows].reshape(re, de)

    # 0/1 segment matrix: seg[l, j] = 1 iff lane l belongs to packed row j.
    # (All-ones (de,1) column when groups == 1.)  Built once, kept resident.
    lane = jnp.arange(de, dtype=jnp.int32)[:, None]
    col = jnp.arange(groups, dtype=jnp.int32)[None, :]
    seg = (lane // d == col).astype(jnp.float32)

    # --- Tile sizing: generation-aware budget, counting in-kernel temps ------
    vmem_limit, tile_budget = _vmem_config()
    de_pad = _round_up(de, 128)            # lanes pad to 128 in VMEM
    per_row_bytes = (
        2 * 2 * de_pad * itemsize          # 2 operands x 2 pipeline buffers (native)
        + 5 * de_pad * 4                   # f32 temps: x1, x2, prod, sq1, sq2
    )
    fit = max(1, tile_budget // per_row_bytes)

    sub = max(8, 32 // itemsize)           # sublane multiple: 8 f32 / 16 bf16 / 32 i8
    tile_rows = min(int(max_tile_rows), int(fit))
    tile_rows = max(sub, _round_down(tile_rows, sub))
    if re >= 2 * sub:
        # Keep at least 2 grid blocks so the "parallel" row axis feeds both
        # TensorCores on v7x (no effect on single-TC v5e/v6e).
        tile_rows = min(tile_rows, max(sub, _round_down(pl.cdiv(re, 2), sub)))
    if tile_rows >= re:
        tile_rows = re                     # single full-array block (always legal)
    num_blocks = pl.cdiv(re, tile_rows)

    kernel = functools.partial(
        _cosine_loss_kernel, tile_rows=tile_rows, valid_rows=re,
    )

    flops = 9 * main_rows * d + 12 * re * groups
    transcendentals = 3 * re * groups
    bytes_accessed = (
        2 * main_rows * d * itemsize + num_blocks * 8 * 128 * 4 + de * groups * 4
    )

    partials = pl.pallas_call(
        kernel,
        out_shape=jax.ShapeDtypeStruct((num_blocks, 8, 128), jnp.float32),
        grid_spec=pltpu.PrefetchScalarGridSpec(
            num_scalar_prefetch=0,
            grid=(num_blocks,),
            in_specs=[
                pl.BlockSpec((tile_rows, de), lambda i: (i, 0)),
                pl.BlockSpec((tile_rows, de), lambda i: (i, 0)),
                # Constant block index -> seg stays resident, no per-step DMA.
                pl.BlockSpec((de, groups), lambda i: (0, 0)),
            ],
            out_specs=pl.BlockSpec((1, 8, 128), lambda i: (i, 0, 0)),
        ),
        compiler_params=pltpu.CompilerParams(
            dimension_semantics=("parallel",),
            vmem_limit_bytes=int(vmem_limit),
        ),
        cost_estimate=pl.CostEstimate(
            flops=int(flops),
            transcendentals=int(transcendentals),
            bytes_accessed=int(bytes_accessed),
        ),
    )(x1m, x2m, seg)

    # Tiny final reduce of one scalar per block, then the mean over all rows.
    kernel_sum = jnp.sum(partials[:, 0, 0])
    return (kernel_sum + rem_sum) / jnp.float32(total_rows)


def _reference(x1, x2):
    sim = jnp.sum(x1 * x2, axis=-1) / (
        jnp.linalg.norm(x1, axis=-1) * jnp.linalg.norm(x2, axis=-1) + EPSILON
    )
    return jnp.mean(1.0 - sim)


if __name__ == "__main__":
    key = jax.random.PRNGKey(0)
    k1, k2, k3, k4 = jax.random.split(key, 4)

    # Primary case implied by the module: batch=2, seq=8, hidden=32 (lane-packed).
    x1 = jax.random.normal(k1, (2, 8, 32), dtype=jnp.float32)
    x2 = jax.random.normal(k2, (2, 8, 32), dtype=jnp.float32)
    loss = jax.block_until_ready(cosine_embedding_loss(x1, x2))
    ref = _reference(x1, x2)
    assert jnp.allclose(loss, ref, rtol=2e-3, atol=2e-3), (loss, ref)

    # Lane-packed path with multiple blocks and a masked partial last block.
    a1 = jax.random.normal(k3, (5, 8, 32), dtype=jnp.float32)
    a2 = jax.random.normal(k4, (5, 8, 32), dtype=jnp.float32)
    loss2 = jax.block_until_ready(cosine_embedding_loss(a1, a2, max_tile_rows=8))
    ref2 = _reference(a1, a2)
    assert jnp.allclose(loss2, ref2, rtol=2e-3, atol=2e-3), (loss2, ref2)

    # Unpacked path (D > 128), multi-block, masked partial last block.
    b1 = jax.random.normal(k1, (3, 7, 160), dtype=jnp.float32)
    b2 = jax.random.normal(k2, (3, 7, 160), dtype=jnp.float32)
    loss3 = jax.block_until_ready(cosine_embedding_loss(b1, b2, max_tile_rows=8))
    ref3 = _reference(b1, b2)
    assert jnp.allclose(loss3, ref3, rtol=1e-4, atol=1e-5), (loss3, ref3)

    # bf16 inputs stream at native width; accumulation stays f32 in-kernel.
    c1 = jax.random.normal(k3, (2, 8, 32), dtype=jnp.bfloat16)
    c2 = jax.random.normal(k4, (2, 8, 32), dtype=jnp.bfloat16)
    loss4 = jax.block_until_ready(cosine_embedding_loss(c1, c2))
    ref4 = _reference(c1.astype(jnp.float32), c2.astype(jnp.float32))
    assert jnp.allclose(loss4, ref4, rtol=2e-3, atol=2e-3), (loss4, ref4)

    # Small-D case where rows are NOT a multiple of the packing group (g=4):
    # 4 rows go through the packed kernel, the 3 leftover rows via the JAX tail.
    d1 = jax.random.normal(k1, (1, 7, 32), dtype=jnp.float32)
    d2 = jax.random.normal(k2, (1, 7, 32), dtype=jnp.float32)
    loss5 = jax.block_until_ready(cosine_embedding_loss(d1, d2))
    ref5 = _reference(d1, d2)
    assert jnp.allclose(loss5, ref5, rtol=2e-3, atol=2e-3), (loss5, ref5)

    print("KERNEL_OK")
</pallas_src>

<mosaic_0001>
module attributes {stable_mosaic.version = 11 : i64} {
  func.func @_cosine_loss_kernel(%arg0: i32, %arg1: memref<4x128xf32, #tpu.memory_space<vmem>>, %arg2: memref<4x128xf32, #tpu.memory_space<vmem>>, %arg3: memref<128x4xf32, #tpu.memory_space<vmem>>, %arg4: memref<1x8x128xf32, #tpu.memory_space<vmem>>) attributes {dimension_semantics = [#tpu.dimension_semantics<parallel>], iteration_bounds = array<i64: 1>, scalar_prefetch = 0 : i64, scratch_operands = 0 : i64, tpu.core_type = #tpu.core_type<tc>, window_params = [{transform_indices = @transform_0, window_bounds = array<i64: 4, 128>}, {transform_indices = @transform_1, window_bounds = array<i64: 4, 128>}, {pipeline_mode = #tpu.pipeline_mode<synchronous>, transform_indices = @transform_2, window_bounds = array<i64: 128, 4>}, {transform_indices = @transform_3, window_bounds = array<i64: 1, 8, 128>}]} {
    %c0 = arith.constant 0 : index
    %c0_0 = arith.constant 0 : index
    %0 = vector.load %arg1[%c0, %c0_0] : memref<4x128xf32, #tpu.memory_space<vmem>>, vector<4x128xf32>
    %c0_1 = arith.constant 0 : index
    %c0_2 = arith.constant 0 : index
    %1 = vector.load %arg2[%c0_1, %c0_2] : memref<4x128xf32, #tpu.memory_space<vmem>>, vector<4x128xf32>
    %c0_3 = arith.constant 0 : index
    %c0_4 = arith.constant 0 : index
    %2 = vector.load %arg3[%c0_3, %c0_4] : memref<128x4xf32, #tpu.memory_space<vmem>>, vector<128x4xf32>
    %3 = arith.mulf %0, %1 : vector<4x128xf32>
    %4 = arith.mulf %0, %0 : vector<4x128xf32>
    %5 = arith.mulf %1, %1 : vector<4x128xf32>
    %cst = arith.constant dense<0.000000e+00> : vector<4x4xf32>
    %6 = tpu.matmul %3, %2, %cst {dimension_numbers = #tpu.dot_dimension_numbers<[1], [0], [0], [1], [0, 0, 1, 1], [], []>, precision = #tpu.contract_precision<fp32>} : vector<4x128xf32>, vector<128x4xf32>, vector<4x4xf32> -> vector<4x4xf32>
    %cst_5 = arith.constant dense<0.000000e+00> : vector<4x4xf32>
    %7 = tpu.matmul %4, %2, %cst_5 {dimension_numbers = #tpu.dot_dimension_numbers<[1], [0], [0], [1], [0, 0, 1, 1], [], []>, precision = #tpu.contract_precision<fp32>} : vector<4x128xf32>, vector<128x4xf32>, vector<4x4xf32> -> vector<4x4xf32>
    %cst_6 = arith.constant dense<0.000000e+00> : vector<4x4xf32>
    %8 = tpu.matmul %5, %2, %cst_6 {dimension_numbers = #tpu.dot_dimension_numbers<[1], [0], [0], [1], [0, 0, 1, 1], [], []>, precision = #tpu.contract_precision<fp32>} : vector<4x128xf32>, vector<128x4xf32>, vector<4x4xf32> -> vector<4x4xf32>
    %9 = math.sqrt %7 : vector<4x4xf32>
    %10 = math.sqrt %8 : vector<4x4xf32>
    %11 = arith.mulf %9, %10 : vector<4x4xf32>
    %cst_7 = arith.constant 9.99999996E-13 : f32
    %12 = vector.broadcast %cst_7 : f32 to vector<4x4xf32>
    %13 = arith.addf %11, %12 : vector<4x4xf32>
    %14 = arith.divf %6, %13 : vector<4x4xf32>
    %cst_8 = arith.constant 1.000000e+00 : f32
    %15 = vector.broadcast %cst_8 : f32 to vector<4x4xf32>
    %16 = arith.subf %15, %14 : vector<4x4xf32>
    %17 = vector.shape_cast %16 : vector<4x4xf32> to vector<1x4x4xf32>
    %cst_9 = arith.constant dense<0.000000e+00> : vector<1xf32>
    %18 = vector.multi_reduction <add>, %17, %cst_9 [1, 2] : vector<1x4x4xf32> to vector<1xf32>
    %19 = vector.shape_cast %18 : vector<1xf32> to vector<1x1x1xf32>
    %20 = vector.extract %19[0, 0, 0] : f32 from vector<1x1x1xf32>
    %21 = vector.broadcast %20 : f32 to vector<1x8x128xf32>
    %c0_10 = arith.constant 0 : index
    %c0_11 = arith.constant 0 : index
    %c0_12 = arith.constant 0 : index
    %22 = vector.load %arg4[%c0_10, %c0_11, %c0_12] : memref<1x8x128xf32, #tpu.memory_space<vmem>>, vector<1x8x128xf32>
    tpu.vector_store %arg4[%c0_10, %c0_11, %c0_12], %21 {strides = array<i32>} : memref<1x8x128xf32, #tpu.memory_space<vmem>>, vector<1x8x128xf32>,
    return
  }
  func.func @transform_0(%arg0: i32) -> (i32, i32) {
    %c0_i32 = arith.constant 0 : i32
    %c0_i32_0 = arith.constant 0 : i32
    return %arg0, %c0_i32 : i32, i32
  }
  func.func @transform_1(%arg0: i32) -> (i32, i32) {
    %c0_i32 = arith.constant 0 : i32
    %c0_i32_0 = arith.constant 0 : i32
    return %arg0, %c0_i32 : i32, i32
  }
  func.func @transform_2(%arg0: i32) -> (i32, i32) {
    %c0_i32 = arith.constant 0 : i32
    %c0_i32_0 = arith.constant 0 : i32
    %c0_i32_1 = arith.constant 0 : i32
    return %c0_i32, %c0_i32_0 : i32, i32
  }
  func.func @transform_3(%arg0: i32) -> (i32, i32, i32) {
    %c0_i32 = arith.constant 0 : i32
    %c0_i32_0 = arith.constant 0 : i32
    %c0_i32_1 = arith.constant 0 : i32
    return %arg0, %c0_i32, %c0_i32_0 : i32, i32, i32
  }
}

</mosaic_0001>

<llo_original>
// kernel: tpu_custom_call.1
$region0: #{tpu_custom_call.1}
  #allocation0 [shape = 'u32[]', space=smem, size = 0x4, offset = 0x4, fixed_abs, tag = 'smem constant byte address 0x4 - core index']
  #allocation1 [shape = 'u32[72,128]{1,0:T(1,128)}', space=vmem, size = 0x9000, scoped, tag = 'internal scratch']
  %s0 = inlined_call_operand.vmem [shape: f32[4,128], index: 0, kind: input, shape index: {}]
  %s1 = inlined_call_operand.vmem [shape: f32[4,128], index: 1, kind: input, shape index: {}]
  %s2 = inlined_call_operand.vmem [shape: f32[128,4], index: 2, kind: input, shape index: {}]
  %s3 = inlined_call_operand.hbm [shape: f32[1,8,128], index: 3, kind: output, shape index: {}]
  %s4 = sld [smem:[#allocation0]]
  $region22: #{tpu_custom_call.1} parent=0
    _
  %s6 = ssub.s32 1, %s4
  %s7 = scalar_select 0, %s6, %s4
  $region1: #{tpu_custom_call.1} parent=0
    #allocation2 [shape = 'u8[4096]{0}', space=vmem, size = 0x1000, scoped, tag = 'output window, operand 0, single buffered']
    #allocation3 [shape = 's32[1]{0}', space=sflag, size = 0x4, scoped, tag = 'scoped memory for tpu_custom_call.1']
    %8 = vsyncpa [#allocation3], 0
    // Predicated region
    $region2: #{tpu_custom_call.1} parent=1 // pred_check
      _
    $region3: #{tpu_custom_call.1} parent=1 // pred_check_branch
      %10 = sbr.rel (0) target = $region5
    $region4: #{tpu_custom_call.1} parent=1 // pred_region
      _
    $region5: #{tpu_custom_call.1} parent=1 // pred_fallthru
      _
    // Predicated region
    $region6: #{tpu_custom_call.1} parent=1 // pred_check
      _
    $region7: #{tpu_custom_call.1} parent=1 // pred_check_branch
      %12 = sbr.rel (0) target = $region9
    $region8: #{tpu_custom_call.1} parent=1 // pred_region
      _
    $region9: #{tpu_custom_call.1} parent=1 // pred_fallthru
      _
    // Predicated region
    $region10: #{tpu_custom_call.1} parent=1 // pred_check
      _
    $region11: #{tpu_custom_call.1} parent=1 // pred_check_branch
      %14 = sbr.rel (0) target = $region13
    $region12: #{tpu_custom_call.1} parent=1 // pred_region
      _
    $region13: #{tpu_custom_call.1} parent=1 // pred_fallthru
      _
    %v15 = vld [vmem:[%s0] sm:$0xf]
    %v16 = vld [vmem:[%s1] sm:$0xf]
    %v17 = vld [vmem:[%s2] sm:$0xff]
    %v18 = vld [vmem:[%s2 + $0x8] sm:$0xff]
    %v19 = vld [vmem:[%s2 + $0x10] sm:$0xff]
    %v20 = vld [vmem:[%s2 + $0x18] sm:$0xff]
    %v21 = vld [vmem:[%s2 + $0x20] sm:$0xff]
    %v22 = vld [vmem:[%s2 + $0x28] sm:$0xff]
    %v23 = vld [vmem:[%s2 + $0x30] sm:$0xff]
    %v24 = vld [vmem:[%s2 + $0x38] sm:$0xff]
    %v25 = vld [vmem:[%s2 + $0x40] sm:$0xff]
    %v26 = vld [vmem:[%s2 + $0x48] sm:$0xff]
    %v27 = vld [vmem:[%s2 + $0x50] sm:$0xff]
    %v28 = vld [vmem:[%s2 + $0x58] sm:$0xff]
    %v29 = vld [vmem:[%s2 + $0x60] sm:$0xff]
    %v30 = vld [vmem:[%s2 + $0x68] sm:$0xff]
    %v31 = vld [vmem:[%s2 + $0x70] sm:$0xff]
    %v32 = vld [vmem:[%s2 + $0x78] sm:$0xff]
    %v33 = vmul.f32 %v15, %v16
    %v34 = vmul.f32 %v15, %v15
    %v35 = vmul.f32 %v16, %v16
    %v36 = vand.u32 %v32, 4294901760
    %37 = vmatpush.msra.mxu0 %v36
    %v38 = vand.u32 %v31, 4294901760
    %39 = vmatpush.msra.mxu0 %v38
    %v40 = vand.u32 %v30, 4294901760
    %41 = vmatpush.msra.mxu0 %v40
    %v42 = vand.u32 %v29, 4294901760
    %43 = vmatpush.msra.mxu0 %v42
    %v44 = vand.u32 %v28, 4294901760
    %45 = vmatpush.msra.mxu0 %v44
    %v46 = vand.u32 %v27, 4294901760
    %47 = vmatpush.msra.mxu0 %v46
    %v48 = vand.u32 %v26, 4294901760
    %49 = vmatpush.msra.mxu0 %v48
    %v50 = vand.u32 %v25, 4294901760
    %51 = vmatpush.msra.mxu0 %v50
    %v52 = vand.u32 %v24, 4294901760
    %53 = vmatpush.msra.mxu0 %v52
    %v54 = vand.u32 %v23, 4294901760
    %55 = vmatpush.msra.mxu0 %v54
    %v56 = vand.u32 %v22, 4294901760
    %57 = vmatpush.msra.mxu0 %v56
    %v58 = vand.u32 %v21, 4294901760
    %59 = vmatpush.msra.mxu0 %v58
    %v60 = vand.u32 %v20, 4294901760
    %61 = vmatpush.msra.mxu0 %v60
    %v62 = vand.u32 %v19, 4294901760
    %63 = vmatpush.msra.mxu0 %v62
    %v64 = vand.u32 %v18, 4294901760
    %65 = vmatpush.msra.mxu0 %v64
    %v66 = vand.u32 %v17, 4294901760
    %67 = vmatpush.msra.mxu0 %v66
    %v68 = vand.u32 %v33, 4294901760
    %v69 = vsub.f32 %v33, %v68
    %v70 = vand.u32 %v69, 4294901760
    %v71 = vsub.f32 %v69, %v70
    %v72 = vand.u32 %v71, 4294901760
    %73 = vmatmul.f32.gmra.mxu0 %v72
    %v74 = vpop.f32.mrf.mxu0
    %v75 = vadd.f32 0.0, %v74
    %76 = vdwg.mxu0
    %v77 = vand.u32 %v32, 4294901760
    %v78 = vsub.f32 %v32, %v77
    %v79 = vand.u32 %v78, 4294901760
    %v80 = vsub.f32 %v78, %v79
    %v81 = vand.u32 %v80, 4294901760
    %82 = vmatpush.msra.mxu0 %v81
    %v83 = vand.u32 %v31, 4294901760
    %v84 = vsub.f32 %v31, %v83
    %v85 = vand.u32 %v84, 4294901760
    %v86 = vsub.f32 %v84, %v85
    %v87 = vand.u32 %v86, 4294901760
    %88 = vmatpush.msra.mxu0 %v87
    %v89 = vand.u32 %v30, 4294901760
    %v90 = vsub.f32 %v30, %v89
    %v91 = vand.u32 %v90, 4294901760
    %v92 = vsub.f32 %v90, %v91
    %v93 = vand.u32 %v92, 4294901760
    %94 = vmatpush.msra.mxu0 %v93
    %v95 = vand.u32 %v29, 4294901760
    %v96 = vsub.f32 %v29, %v95
    %v97 = vand.u32 %v96, 4294901760
    %v98 = vsub.f32 %v96, %v97
    %v99 = vand.u32 %v98, 4294901760
    %100 = vmatpush.msra.mxu0 %v99
    %v101 = vand.u32 %v28, 4294901760
    %v102 = vsub.f32 %v28, %v101
    %v103 = vand.u32 %v102, 4294901760
    %v104 = vsub.f32 %v102, %v103
    %v105 = vand.u32 %v104, 4294901760
    %106 = vmatpush.msra.mxu0 %v105
    %v107 = vand.u32 %v27, 4294901760
    %v108 = vsub.f32 %v27, %v107
    %v109 = vand.u32 %v108, 4294901760
    %v110 = vsub.f32 %v108, %v109
    %v111 = vand.u32 %v110, 4294901760
    %112 = vmatpush.msra.mxu0 %v111
    %v113 = vand.u32 %v26, 4294901760
    %v114 = vsub.f32 %v26, %v113
    %v115 = vand.u32 %v114, 4294901760
    %v116 = vsub.f32 %v114, %v115
    %v117 = vand.u32 %v116, 4294901760
    %118 = vmatpush.msra.mxu0 %v117
    %v119 = vand.u32 %v25, 4294901760
    %v120 = vsub.f32 %v25, %v119
    %v121 = vand.u32 %v120, 4294901760
    %v122 = vsub.f32 %v120, %v121
    %v123 = vand.u32 %v122, 4294901760
    %124 = vmatpush.msra.mxu0 %v123
    %v125 = vand.u32 %v24, 4294901760
    %v126 = vsub.f32 %v24, %v125
    %v127 = vand.u32 %v126, 4294901760
    %v128 = vsub.f32 %v126, %v127
    %v129 = vand.u32 %v128, 4294901760
    %130 = vmatpush.msra.mxu0 %v129
    %v131 = vand.u32 %v23, 4294901760
    %v132 = vsub.f32 %v23, %v131
    %v133 = vand.u32 %v132, 4294901760
    %v134 = vsub.f32 %v132, %v133
    %v135 = vand.u32 %v134, 4294901760
    %136 = vmatpush.msra.mxu0 %v135
    %v137 = vand.u32 %v22, 4294901760
    %v138 = vsub.f32 %v22, %v137
    %v139 = vand.u32 %v138, 4294901760
    %v140 = vsub.f32 %v138, %v139
    %v141 = vand.u32 %v140, 4294901760
    %142 = vmatpush.msra.mxu0 %v141
    %v143 = vand.u32 %v21, 4294901760
    %v144 = vsub.f32 %v21, %v143
    %v145 = vand.u32 %v144, 4294901760
    %v146 = vsub.f32 %v144, %v145
    %v147 = vand.u32 %v146, 4294901760
    %148 = vmatpush.msra.mxu0 %v147
    %v149 = vand.u32 %v20, 4294901760
    %v150 = vsub.f32 %v20, %v149
    %v151 = vand.u32 %v150, 4294901760
    %v152 = vsub.f32 %v150, %v151
    %v153 = vand.u32 %v152, 4294901760
    %154 = vmatpush.msra.mxu0 %v153
    %v155 = vand.u32 %v19, 4294901760
    %v156 = vsub.f32 %v19, %v155
    %v157 = vand.u32 %v156, 4294901760
    %v158 = vsub.f32 %v156, %v157
    %v159 = vand.u32 %v158, 4294901760
    %160 = vmatpush.msra.mxu0 %v159
    %v161 = vand.u32 %v18, 4294901760
    %v162 = vsub.f32 %v18, %v161
    %v163 = vand.u32 %v162, 4294901760
    %v164 = vsub.f32 %v162, %v163
    %v165 = vand.u32 %v164, 4294901760
    %166 = vmatpush.msra.mxu0 %v165
    %v167 = vand.u32 %v17, 4294901760
    %v168 = vsub.f32 %v17, %v167
    %v169 = vand.u32 %v168, 4294901760
    %v170 = vsub.f32 %v168, %v169
    %v171 = vand.u32 %v170, 4294901760
    %172 = vmatpush.msra.mxu0 %v171
    %v173 = vand.u32 %v33, 4294901760
    %174 = vmatmul.f32.gmra.mxu0 %v173
    %v175 = vpop.f32.mrf.mxu0
    %v176 = vadd.f32 %v75, %v175
    %177 = vdwg.mxu0
    %v178 = vand.u32 %v32, 4294901760
    %v179 = vsub.f32 %v32, %v178
    %180 = vmatpush.msra.mxu0 %v179
    %v181 = vand.u32 %v31, 4294901760
    %v182 = vsub.f32 %v31, %v181
    %183 = vmatpush.msra.mxu0 %v182
    %v184 = vand.u32 %v30, 4294901760
    %v185 = vsub.f32 %v30, %v184
    %186 = vmatpush.msra.mxu0 %v185
    %v187 = vand.u32 %v29, 4294901760
    %v188 = vsub.f32 %v29, %v187
    %189 = vmatpush.msra.mxu0 %v188
    %v190 = vand.u32 %v28, 4294901760
    %v191 = vsub.f32 %v28, %v190
    %192 = vmatpush.msra.mxu0 %v191
    %v193 = vand.u32 %v27, 4294901760
    %v194 = vsub.f32 %v27, %v193
    %195 = vmatpush.msra.mxu0 %v194
    %v196 = vand.u32 %v26, 4294901760
    %v197 = vsub.f32 %v26, %v196
    %198 = vmatpush.msra.mxu0 %v197
    %v199 = vand.u32 %v25, 4294901760
    %v200 = vsub.f32 %v25, %v199
    %201 = vmatpush.msra.mxu0 %v200
    %v202 = vand.u32 %v24, 4294901760
    %v203 = vsub.f32 %v24, %v202
    %204 = vmatpush.msra.mxu0 %v203
    %v205 = vand.u32 %v23, 4294901760
    %v206 = vsub.f32 %v23, %v205
    %207 = vmatpush.msra.mxu0 %v206
    %v208 = vand.u32 %v22, 4294901760
    %v209 = vsub.f32 %v22, %v208
    %210 = vmatpush.msra.mxu0 %v209
    %v211 = vand.u32 %v21, 4294901760
    %v212 = vsub.f32 %v21, %v211
    %213 = vmatpush.msra.mxu0 %v212
    %v214 = vand.u32 %v20, 4294901760
    %v215 = vsub.f32 %v20, %v214
    %216 = vmatpush.msra.mxu0 %v215
    %v217 = vand.u32 %v19, 4294901760
    %v218 = vsub.f32 %v19, %v217
    %219 = vmatpush.msra.mxu0 %v218
    %v220 = vand.u32 %v18, 4294901760
    %v221 = vsub.f32 %v18, %v220
    %222 = vmatpush.msra.mxu0 %v221
    %v223 = vand.u32 %v17, 4294901760
    %v224 = vsub.f32 %v17, %v223
    %225 = vmatpush.msra.mxu0 %v224
    %v226 = vand.u32 %v33, 4294901760
    %v227 = vsub.f32 %v33, %v226
    %228 = vmatmul.f32.gmra.mxu0 %v227
    %v229 = vpop.f32.mrf.mxu0
    %v230 = vadd.f32 %v176, %v229
    %231 = vdwg.mxu0
    %v232 = vand.u32 %v32, 4294901760
    %233 = vmatpush.msra.mxu0 %v232
    %v234 = vand.u32 %v31, 4294901760
    %235 = vmatpush.msra.mxu0 %v234
    %v236 = vand.u32 %v30, 4294901760
    %237 = vmatpush.msra.mxu0 %v236
    %v238 = vand.u32 %v29, 4294901760
    %239 = vmatpush.msra.mxu0 %v238
    %v240 = vand.u32 %v28, 4294901760
    %241 = vmatpush.msra.mxu0 %v240
    %v242 = vand.u32 %v27, 4294901760
    %243 = vmatpush.msra.mxu0 %v242
    %v244 = vand.u32 %v26, 4294901760
    %245 = vmatpush.msra.mxu0 %v244
    %v246 = vand.u32 %v25, 4294901760
    %247 = vmatpush.msra.mxu0 %v246
    %v248 = vand.u32 %v24, 4294901760
    %249 = vmatpush.msra.mxu0 %v248
    %v250 = vand.u32 %v23, 4294901760
    %251 = vmatpush.msra.mxu0 %v250
    %v252 = vand.u32 %v22, 4294901760
    %253 = vmatpush.msra.mxu0 %v252
    %v254 = vand.u32 %v21, 4294901760
    %255 = vmatpush.msra.mxu0 %v254
    %v256 = vand.u32 %v20, 4294901760
    %257 = vmatpush.msra.mxu0 %v256
    %v258 = vand.u32 %v19, 4294901760
    %259 = vmatpush.msra.mxu0 %v258
    %v260 = vand.u32 %v18, 4294901760
    %261 = vmatpush.msra.mxu0 %v260
    %v262 = vand.u32 %v17, 4294901760
    %263 = vmatpush.msra.mxu0 %v262
    %v264 = vand.u32 %v33, 4294901760
    %v265 = vsub.f32 %v33, %v264
    %v266 = vand.u32 %v265, 4294901760
    %267 = vmatmul.f32.gmra.mxu0 %v266
    %v268 = vpop.f32.mrf.mxu0
    %v269 = vadd.f32 %v230, %v268
    %270 = vdwg.mxu0
    %v271 = vand.u32 %v32, 4294901760
    %v272 = vsub.f32 %v32, %v271
    %v273 = vand.u32 %v272, 4294901760
    %274 = vmatpush.msra.mxu0 %v273
    %v275 = vand.u32 %v31, 4294901760
    %v276 = vsub.f32 %v31, %v275
    %v277 = vand.u32 %v276, 4294901760
    %278 = vmatpush.msra.mxu0 %v277
    %v279 = vand.u32 %v30, 4294901760
    %v280 = vsub.f32 %v30, %v279
    %v281 = vand.u32 %v280, 4294901760
    %282 = vmatpush.msra.mxu0 %v281
    %v283 = vand.u32 %v29, 4294901760
    %v284 = vsub.f32 %v29, %v283
    %v285 = vand.u32 %v284, 4294901760
    %286 = vmatpush.msra.mxu0 %v285
    %v287 = vand.u32 %v28, 4294901760
    %v288 = vsub.f32 %v28, %v287
    %v289 = vand.u32 %v288, 4294901760
    %290 = vmatpush.msra.mxu0 %v289
    %v291 = vand.u32 %v27, 4294901760
    %v292 = vsub.f32 %v27, %v291
    %v293 = vand.u32 %v292, 4294901760
    %294 = vmatpush.msra.mxu0 %v293
    %v295 = vand.u32 %v26, 4294901760
    %v296 = vsub.f32 %v26, %v295
    %v297 = vand.u32 %v296, 4294901760
    %298 = vmatpush.msra.mxu0 %v297
    %v299 = vand.u32 %v25, 4294901760
    %v300 = vsub.f32 %v25, %v299
    %v301 = vand.u32 %v300, 4294901760
    %302 = vmatpush.msra.mxu0 %v301
    %v303 = vand.u32 %v24, 4294901760
    %v304 = vsub.f32 %v24, %v303
    %v305 = vand.u32 %v304, 4294901760
    %306 = vmatpush.msra.mxu0 %v305
    %v307 = vand.u32 %v23, 4294901760
    %v308 = vsub.f32 %v23, %v307
    %v309 = vand.u32 %v308, 4294901760
    %310 = vmatpush.msra.mxu0 %v309
    %v311 = vand.u32 %v22, 4294901760
    %v312 = vsub.f32 %v22, %v311
    %v313 = vand.u32 %v312, 4294901760
    %314 = vmatpush.msra.mxu0 %v313
    %v315 = vand.u32 %v21, 4294901760
    %v316 = vsub.f32 %v21, %v315
    %v317 = vand.u32 %v316, 4294901760
    %318 = vmatpush.msra.mxu0 %v317
    %v319 = vand.u32 %v20, 4294901760
    %v320 = vsub.f32 %v20, %v319
    %v321 = vand.u32 %v320, 4294901760
    %322 = vmatpush.msra.mxu0 %v321
    %v323 = vand.u32 %v19, 4294901760
    %v324 = vsub.f32 %v19, %v323
    %v325 = vand.u32 %v324, 4294901760
    %326 = vmatpush.msra.mxu0 %v325
    %v327 = vand.u32 %v18, 4294901760
    %v328 = vsub.f32 %v18, %v327
    %v329 = vand.u32 %v328, 4294901760
    %330 = vmatpush.msra.mxu0 %v329
    %v331 = vand.u32 %v17, 4294901760
    %v332 = vsub.f32 %v17, %v331
    %v333 = vand.u32 %v332, 4294901760
    %334 = vmatpush.msra.mxu0 %v333
    %v335 = vand.u32 %v33, 4294901760
    %336 = vmatmul.f32.gmra.mxu0 %v335
    %v337 = vpop.f32.mrf.mxu0
    %v338 = vadd.f32 %v269, %v337
    %339 = vdwg.mxu0
    %v340 = vand.u32 %v32, 4294901760
    %341 = vmatpush.msra.mxu0 %v340
    %v342 = vand.u32 %v31, 4294901760
    %343 = vmatpush.msra.mxu0 %v342
    %v344 = vand.u32 %v30, 4294901760
    %345 = vmatpush.msra.mxu0 %v344
    %v346 = vand.u32 %v29, 4294901760
    %347 = vmatpush.msra.mxu0 %v346
    %v348 = vand.u32 %v28, 4294901760
    %349 = vmatpush.msra.mxu0 %v348
    %v350 = vand.u32 %v27, 4294901760
    %351 = vmatpush.msra.mxu0 %v350
    %v352 = vand.u32 %v26, 4294901760
    %353 = vmatpush.msra.mxu0 %v352
    %v354 = vand.u32 %v25, 4294901760
    %355 = vmatpush.msra.mxu0 %v354
    %v356 = vand.u32 %v24, 4294901760
    %357 = vmatpush.msra.mxu0 %v356
    %v358 = vand.u32 %v23, 4294901760
    %359 = vmatpush.msra.mxu0 %v358
    %v360 = vand.u32 %v22, 4294901760
    %361 = vmatpush.msra.mxu0 %v360
    %v362 = vand.u32 %v21, 4294901760
    %363 = vmatpush.msra.mxu0 %v362
    %v364 = vand.u32 %v20, 4294901760
    %365 = vmatpush.msra.mxu0 %v364
    %v366 = vand.u32 %v19, 4294901760
    %367 = vmatpush.msra.mxu0 %v366
    %v368 = vand.u32 %v18, 4294901760
    %369 = vmatpush.msra.mxu0 %v368
    %v370 = vand.u32 %v17, 4294901760
    %371 = vmatpush.msra.mxu0 %v370
    %v372 = vand.u32 %v33, 4294901760
    %373 = vmatmul.f32.gmra.mxu0 %v372
    %v374 = vpop.f32.mrf.mxu0
    %v375 = vadd.f32 %v338, %v374
    %376 = vdwg.mxu0
    %v377 = vand.u32 %v32, 4294901760
    %378 = vmatpush.msra.mxu0 %v377
    %v379 = vand.u32 %v31, 4294901760
    %380 = vmatpush.msra.mxu0 %v379
    %v381 = vand.u32 %v30, 4294901760
    %382 = vmatpush.msra.mxu0 %v381
    %v383 = vand.u32 %v29, 4294901760
    %384 = vmatpush.msra.mxu0 %v383
    %v385 = vand.u32 %v28, 4294901760
    %386 = vmatpush.msra.mxu0 %v385
    %v387 = vand.u32 %v27, 4294901760
    %388 = vmatpush.msra.mxu0 %v387
    %v389 = vand.u32 %v26, 4294901760
    %390 = vmatpush.msra.mxu0 %v389
    %v391 = vand.u32 %v25, 4294901760
    %392 = vmatpush.msra.mxu0 %v391
    %v393 = vand.u32 %v24, 4294901760
    %394 = vmatpush.msra.mxu0 %v393
    %v395 = vand.u32 %v23, 4294901760
    %396 = vmatpush.msra.mxu0 %v395
    %v397 = vand.u32 %v22, 4294901760
    %398 = vmatpush.msra.mxu0 %v397
    %v399 = vand.u32 %v21, 4294901760
    %400 = vmatpush.msra.mxu0 %v399
    %v401 = vand.u32 %v20, 4294901760
    %402 = vmatpush.msra.mxu0 %v401
    %v403 = vand.u32 %v19, 4294901760
    %404 = vmatpush.msra.mxu0 %v403
    %v405 = vand.u32 %v18, 4294901760
    %406 = vmatpush.msra.mxu0 %v405
    %v407 = vand.u32 %v17, 4294901760
    %408 = vmatpush.msra.mxu0 %v407
    %v409 = vand.u32 %v34, 4294901760
    %v410 = vsub.f32 %v34, %v409
    %v411 = vand.u32 %v410, 4294901760
    %v412 = vsub.f32 %v410, %v411
    %v413 = vand.u32 %v412, 4294901760
    %414 = vmatmul.f32.gmra.mxu0 %v413
    %v415 = vpop.f32.mrf.mxu0
    %v416 = vadd.f32 0.0, %v415
    %417 = vdwg.mxu0
    %v418 = vand.u32 %v32, 4294901760
    %v419 = vsub.f32 %v32, %v418
    %v420 = vand.u32 %v419, 4294901760
    %v421 = vsub.f32 %v419, %v420
    %v422 = vand.u32 %v421, 4294901760
    %423 = vmatpush.msra.mxu0 %v422
    %v424 = vand.u32 %v31, 4294901760
    %v425 = vsub.f32 %v31, %v424
    %v426 = vand.u32 %v425, 4294901760
    %v427 = vsub.f32 %v425, %v426
    %v428 = vand.u32 %v427, 4294901760
    %429 = vmatpush.msra.mxu0 %v428
    %v430 = vand.u32 %v30, 4294901760
    %v431 = vsub.f32 %v30, %v430
    %v432 = vand.u32 %v431, 4294901760
    %v433 = vsub.f32 %v431, %v432
    %v434 = vand.u32 %v433, 4294901760
    %435 = vmatpush.msra.mxu0 %v434
    %v436 = vand.u32 %v29, 4294901760
    %v437 = vsub.f32 %v29, %v436
    %v438 = vand.u32 %v437, 4294901760
    %v439 = vsub.f32 %v437, %v438
    %v440 = vand.u32 %v439, 4294901760
    %441 = vmatpush.msra.mxu0 %v440
    %v442 = vand.u32 %v28, 4294901760
    %v443 = vsub.f32 %v28, %v442
    %v444 = vand.u32 %v443, 4294901760
    %v445 = vsub.f32 %v443, %v444
    %v446 = vand.u32 %v445, 4294901760
    %447 = vmatpush.msra.mxu0 %v446
    %v448 = vand.u32 %v27, 4294901760
    %v449 = vsub.f32 %v27, %v448
    %v450 = vand.u32 %v449, 4294901760
    %v451 = vsub.f32 %v449, %v450
    %v452 = vand.u32 %v451, 4294901760
    %453 = vmatpush.msra.mxu0 %v452
    %v454 = vand.u32 %v26, 4294901760
    %v455 = vsub.f32 %v26, %v454
    %v456 = vand.u32 %v455, 4294901760
    %v457 = vsub.f32 %v455, %v456
    %v458 = vand.u32 %v457, 4294901760
    %459 = vmatpush.msra.mxu0 %v458
    %v460 = vand.u32 %v25, 4294901760
    %v461 = vsub.f32 %v25, %v460
    %v462 = vand.u32 %v461, 4294901760
    %v463 = vsub.f32 %v461, %v462
    %v464 = vand.u32 %v463, 4294901760
    %465 = vmatpush.msra.mxu0 %v464
    %v466 = vand.u32 %v24, 4294901760
    %v467 = vsub.f32 %v24, %v466
    %v468 = vand.u32 %v467, 4294901760
    %v469 = vsub.f32 %v467, %v468
    %v470 = vand.u32 %v469, 4294901760
    %471 = vmatpush.msra.mxu0 %v470
    %v472 = vand.u32 %v23, 4294901760
    %v473 = vsub.f32 %v23, %v472
    %v474 = vand.u32 %v473, 4294901760
    %v475 = vsub.f32 %v473, %v474
    %v476 = vand.u32 %v475, 4294901760
    %477 = vmatpush.msra.mxu0 %v476
    %v478 = vand.u32 %v22, 4294901760
    %v479 = vsub.f32 %v22, %v478
    %v480 = vand.u32 %v479, 4294901760
    %v481 = vsub.f32 %v479, %v480
    %v482 = vand.u32 %v481, 4294901760
    %483 = vmatpush.msra.mxu0 %v482
    %v484 = vand.u32 %v21, 4294901760
    %v485 = vsub.f32 %v21, %v484
    %v486 = vand.u32 %v485, 4294901760
    %v487 = vsub.f32 %v485, %v486
    %v488 = vand.u32 %v487, 4294901760
    %489 = vmatpush.msra.mxu0 %v488
    %v490 = vand.u32 %v20, 4294901760
    %v491 = vsub.f32 %v20, %v490
    %v492 = vand.u32 %v491, 4294901760
    %v493 = vsub.f32 %v491, %v492
    %v494 = vand.u32 %v493, 4294901760
    %495 = vmatpush.msra.mxu0 %v494
    %v496 = vand.u32 %v19, 4294901760
    %v497 = vsub.f32 %v19, %v496
    %v498 = vand.u32 %v497, 4294901760
    %v499 = vsub.f32 %v497, %v498
    %v500 = vand.u32 %v499, 4294901760
    %501 = vmatpush.msra.mxu0 %v500
    %v502 = vand.u32 %v18, 4294901760
    %v503 = vsub.f32 %v18, %v502
    %v504 = vand.u32 %v503, 4294901760
    %v505 = vsub.f32 %v503, %v504
    %v506 = vand.u32 %v505, 4294901760
    %507 = vmatpush.msra.mxu0 %v506
    %v508 = vand.u32 %v17, 4294901760
    %v509 = vsub.f32 %v17, %v508
    %v510 = vand.u32 %v509, 4294901760
    %v511 = vsub.f32 %v509, %v510
    %v512 = vand.u32 %v511, 4294901760
    %513 = vmatpush.msra.mxu0 %v512
    %v514 = vand.u32 %v34, 4294901760
    %515 = vmatmul.f32.gmra.mxu0 %v514
    %v516 = vpop.f32.mrf.mxu0
    %v517 = vadd.f32 %v416, %v516
    %518 = vdwg.mxu0
    %v519 = vand.u32 %v32, 4294901760
    %v520 = vsub.f32 %v32, %v519
    %521 = vmatpush.msra.mxu0 %v520
    %v522 = vand.u32 %v31, 4294901760
    %v523 = vsub.f32 %v31, %v522
    %524 = vmatpush.msra.mxu0 %v523
    %v525 = vand.u32 %v30, 4294901760
    %v526 = vsub.f32 %v30, %v525
    %527 = vmatpush.msra.mxu0 %v526
    %v528 = vand.u32 %v29, 4294901760
    %v529 = vsub.f32 %v29, %v528
    %530 = vmatpush.msra.mxu0 %v529
    %v531 = vand.u32 %v28, 4294901760
    %v532 = vsub.f32 %v28, %v531
    %533 = vmatpush.msra.mxu0 %v532
    %v534 = vand.u32 %v27, 4294901760
    %v535 = vsub.f32 %v27, %v534
    %536 = vmatpush.msra.mxu0 %v535
    %v537 = vand.u32 %v26, 4294901760
    %v538 = vsub.f32 %v26, %v537
    %539 = vmatpush.msra.mxu0 %v538
    %v540 = vand.u32 %v25, 4294901760
    %v541 = vsub.f32 %v25, %v540
    %542 = vmatpush.msra.mxu0 %v541
    %v543 = vand.u32 %v24, 4294901760
    %v544 = vsub.f32 %v24, %v543
    %545 = vmatpush.msra.mxu0 %v544
    %v546 = vand.u32 %v23, 4294901760
    %v547 = vsub.f32 %v23, %v546
    %548 = vmatpush.msra.mxu0 %v547
    %v549 = vand.u32 %v22, 4294901760
    %v550 = vsub.f32 %v22, %v549
    %551 = vmatpush.msra.mxu0 %v550
    %v552 = vand.u32 %v21, 4294901760
    %v553 = vsub.f32 %v21, %v552
    %554 = vmatpush.msra.mxu0 %v553
    %v555 = vand.u32 %v20, 4294901760
    %v556 = vsub.f32 %v20, %v555
    %557 = vmatpush.msra.mxu0 %v556
    %v558 = vand.u32 %v19, 4294901760
    %v559 = vsub.f32 %v19, %v558
    %560 = vmatpush.msra.mxu0 %v559
    %v561 = vand.u32 %v18, 4294901760
    %v562 = vsub.f32 %v18, %v561
    %563 = vmatpush.msra.mxu0 %v562
    %v564 = vand.u32 %v17, 4294901760
    %v565 = vsub.f32 %v17, %v564
    %566 = vmatpush.msra.mxu0 %v565
    %v567 = vand.u32 %v34, 4294901760
    %v568 = vsub.f32 %v34, %v567
    %569 = vmatmul.f32.gmra.mxu0 %v568
    %v570 = vpop.f32.mrf.mxu0
    %v571 = vadd.f32 %v517, %v570
    %572 = vdwg.mxu0
    %v573 = vand.u32 %v32, 4294901760
    %574 = vmatpush.msra.mxu0 %v573
    %v575 = vand.u32 %v31, 4294901760
    %576 = vmatpush.msra.mxu0 %v575
    %v577 = vand.u32 %v30, 4294901760
    %578 = vmatpush.msra.mxu0 %v577
    %v579 = vand.u32 %v29, 4294901760
    %580 = vmatpush.msra.mxu0 %v579
    %v581 = vand.u32 %v28, 4294901760
    %582 = vmatpush.msra.mxu0 %v581
    %v583 = vand.u32 %v27, 4294901760
    %584 = vmatpush.msra.mxu0 %v583
    %v585 = vand.u32 %v26, 4294901760
    %586 = vmatpush.msra.mxu0 %v585
    %v587 = vand.u32 %v25, 4294901760
    %588 = vmatpush.msra.mxu0 %v587
    %v589 = vand.u32 %v24, 4294901760
    %590 = vmatpush.msra.mxu0 %v589
    %v591 = vand.u32 %v23, 4294901760
    %592 = vmatpush.msra.mxu0 %v591
    %v593 = vand.u32 %v22, 4294901760
    %594 = vmatpush.msra.mxu0 %v593
    %v595 = vand.u32 %v21, 4294901760
    %596 = vmatpush.msra.mxu0 %v595
    %v597 = vand.u32 %v20, 4294901760
    %598 = vmatpush.msra.mxu0 %v597
    %v599 = vand.u32 %v19, 4294901760
    %600 = vmatpush.msra.mxu0 %v599
    %v601 = vand.u32 %v18, 4294901760
    %602 = vmatpush.msra.mxu0 %v601
    %v603 = vand.u32 %v17, 4294901760
    %604 = vmatpush.msra.mxu0 %v603
    %v605 = vand.u32 %v34, 4294901760
    %v606 = vsub.f32 %v34, %v605
    %v607 = vand.u32 %v606, 4294901760
    %608 = vmatmul.f32.gmra.mxu0 %v607
    %v609 = vpop.f32.mrf.mxu0
    %v610 = vadd.f32 %v571, %v609
    %611 = vdwg.mxu0
    %v612 = vand.u32 %v32, 4294901760
    %v613 = vsub.f32 %v32, %v612
    %v614 = vand.u32 %v613, 4294901760
    %615 = vmatpush.msra.mxu0 %v614
    %v616 = vand.u32 %v31, 4294901760
    %v617 = vsub.f32 %v31, %v616
    %v618 = vand.u32 %v617, 4294901760
    %619 = vmatpush.msra.mxu0 %v618
    %v620 = vand.u32 %v30, 4294901760
    %v621 = vsub.f32 %v30, %v620
    %v622 = vand.u32 %v621, 4294901760
    %623 = vmatpush.msra.mxu0 %v622
    %v624 = vand.u32 %v29, 4294901760
    %v625 = vsub.f32 %v29, %v624
    %v626 = vand.u32 %v625, 4294901760
    %627 = vmatpush.msra.mxu0 %v626
    %v628 = vand.u32 %v28, 4294901760
    %v629 = vsub.f32 %v28, %v628
    %v630 = vand.u32 %v629, 4294901760
    %631 = vmatpush.msra.mxu0 %v630
    %v632 = vand.u32 %v27, 4294901760
    %v633 = vsub.f32 %v27, %v632
    %v634 = vand.u32 %v633, 4294901760
    %635 = vmatpush.msra.mxu0 %v634
    %v636 = vand.u32 %v26, 4294901760
    %v637 = vsub.f32 %v26, %v636
    %v638 = vand.u32 %v637, 4294901760
    %639 = vmatpush.msra.mxu0 %v638
    %v640 = vand.u32 %v25, 4294901760
    %v641 = vsub.f32 %v25, %v640
    %v642 = vand.u32 %v641, 4294901760
    %643 = vmatpush.msra.mxu0 %v642
    %v644 = vand.u32 %v24, 4294901760
    %v645 = vsub.f32 %v24, %v644
    %v646 = vand.u32 %v645, 4294901760
    %647 = vmatpush.msra.mxu0 %v646
    %v648 = vand.u32 %v23, 4294901760
    %v649 = vsub.f32 %v23, %v648
    %v650 = vand.u32 %v649, 4294901760
    %651 = vmatpush.msra.mxu0 %v650
    %v652 = vand.u32 %v22, 4294901760
    %v653 = vsub.f32 %v22, %v652
    %v654 = vand.u32 %v653, 4294901760
    %655 = vmatpush.msra.mxu0 %v654
    %v656 = vand.u32 %v21, 4294901760
    %v657 = vsub.f32 %v21, %v656
    %v658 = vand.u32 %v657, 4294901760
    %659 = vmatpush.msra.mxu0 %v658
    %v660 = vand.u32 %v20, 4294901760
    %v661 = vsub.f32 %v20, %v660
    %v662 = vand.u32 %v661, 4294901760
    %663 = vmatpush.msra.mxu0 %v662
    %v664 = vand.u32 %v19, 4294901760
    %v665 = vsub.f32 %v19, %v664
    %v666 = vand.u32 %v665, 4294901760
    %667 = vmatpush.msra.mxu0 %v666
    %v668 = vand.u32 %v18, 4294901760
    %v669 = vsub.f32 %v18, %v668
    %v670 = vand.u32 %v669, 4294901760
    %671 = vmatpush.msra.mxu0 %v670
    %v672 = vand.u32 %v17, 4294901760
    %v673 = vsub.f32 %v17, %v672
    %v674 = vand.u32 %v673, 4294901760
    %675 = vmatpush.msra.mxu0 %v674
    %v676 = vand.u32 %v34, 4294901760
    %677 = vmatmul.f32.gmra.mxu0 %v676
    %v678 = vpop.f32.mrf.mxu0
    %v679 = vadd.f32 %v610, %v678
    %680 = vdwg.mxu0
    %v681 = vand.u32 %v32, 4294901760
    %682 = vmatpush.msra.mxu0 %v681
    %v683 = vand.u32 %v31, 4294901760
    %684 = vmatpush.msra.mxu0 %v683
    %v685 = vand.u32 %v30, 4294901760
    %686 = vmatpush.msra.mxu0 %v685
    %v687 = vand.u32 %v29, 4294901760
    %688 = vmatpush.msra.mxu0 %v687
    %v689 = vand.u32 %v28, 4294901760
    %690 = vmatpush.msra.mxu0 %v689
    %v691 = vand.u32 %v27, 4294901760
    %692 = vmatpush.msra.mxu0 %v691
    %v693 = vand.u32 %v26, 4294901760
    %694 = vmatpush.msra.mxu0 %v693
    %v695 = vand.u32 %v25, 4294901760
    %696 = vmatpush.msra.mxu0 %v695
    %v697 = vand.u32 %v24, 4294901760
    %698 = vmatpush.msra.mxu0 %v697
    %v699 = vand.u32 %v23, 4294901760
    %700 = vmatpush.msra.mxu0 %v699
    %v701 = vand.u32 %v22, 4294901760
    %702 = vmatpush.msra.mxu0 %v701
    %v703 = vand.u32 %v21, 4294901760
    %704 = vmatpush.msra.mxu0 %v703
    %v705 = vand.u32 %v20, 4294901760
    %706 = vmatpush.msra.mxu0 %v705
    %v707 = vand.u32 %v19, 4294901760
    %708 = vmatpush.msra.mxu0 %v707
    %v709 = vand.u32 %v18, 4294901760
    %710 = vmatpush.msra.mxu0 %v709
    %v711 = vand.u32 %v17, 4294901760
    %712 = vmatpush.msra.mxu0 %v711
    %v713 = vand.u32 %v34, 4294901760
    %714 = vmatmul.f32.gmra.mxu0 %v713
    %v715 = vpop.f32.mrf.mxu0
    %v716 = vadd.f32 %v679, %v715
    %717 = vdwg.mxu0
    %v718 = vand.u32 %v32, 4294901760
    %719 = vmatpush.msra.mxu0 %v718
    %v720 = vand.u32 %v31, 4294901760
    %721 = vmatpush.msra.mxu0 %v720
    %v722 = vand.u32 %v30, 4294901760
    %723 = vmatpush.msra.mxu0 %v722
    %v724 = vand.u32 %v29, 4294901760
    %725 = vmatpush.msra.mxu0 %v724
    %v726 = vand.u32 %v28, 4294901760
    %727 = vmatpush.msra.mxu0 %v726
    %v728 = vand.u32 %v27, 4294901760
    %729 = vmatpush.msra.mxu0 %v728
    %v730 = vand.u32 %v26, 4294901760
    %731 = vmatpush.msra.mxu0 %v730
    %v732 = vand.u32 %v25, 4294901760
    %733 = vmatpush.msra.mxu0 %v732
    %v734 = vand.u32 %v24, 4294901760
    %735 = vmatpush.msra.mxu0 %v734
    %v736 = vand.u32 %v23, 4294901760
    %737 = vmatpush.msra.mxu0 %v736
    %v738 = vand.u32 %v22, 4294901760
    %739 = vmatpush.msra.mxu0 %v738
    %v740 = vand.u32 %v21, 4294901760
    %741 = vmatpush.msra.mxu0 %v740
    %v742 = vand.u32 %v20, 4294901760
    %743 = vmatpush.msra.mxu0 %v742
    %v744 = vand.u32 %v19, 4294901760
    %745 = vmatpush.msra.mxu0 %v744
    %v746 = vand.u32 %v18, 4294901760
    %747 = vmatpush.msra.mxu0 %v746
    %v748 = vand.u32 %v17, 4294901760
    %749 = vmatpush.msra.mxu0 %v748
    %v750 = vand.u32 %v35, 4294901760
    %v751 = vsub.f32 %v35, %v750
    %v752 = vand.u32 %v751, 4294901760
    %v753 = vsub.f32 %v751, %v752
    %v754 = vand.u32 %v753, 4294901760
    %755 = vmatmul.f32.gmra.mxu0 %v754
    %v756 = vpop.f32.mrf.mxu0
    %v757 = vadd.f32 0.0, %v756
    %758 = vdwg.mxu0
    %v759 = vand.u32 %v32, 4294901760
    %v760 = vsub.f32 %v32, %v759
    %v761 = vand.u32 %v760, 4294901760
    %v762 = vsub.f32 %v760, %v761
    %v763 = vand.u32 %v762, 4294901760
    %764 = vmatpush.msra.mxu0 %v763
    %v765 = vand.u32 %v31, 4294901760
    %v766 = vsub.f32 %v31, %v765
    %v767 = vand.u32 %v766, 4294901760
    %v768 = vsub.f32 %v766, %v767
    %v769 = vand.u32 %v768, 4294901760
    %770 = vmatpush.msra.mxu0 %v769
    %v771 = vand.u32 %v30, 4294901760
    %v772 = vsub.f32 %v30, %v771
    %v773 = vand.u32 %v772, 4294901760
    %v774 = vsub.f32 %v772, %v773
    %v775 = vand.u32 %v774, 4294901760
    %776 = vmatpush.msra.mxu0 %v775
    %v777 = vand.u32 %v29, 4294901760
    %v778 = vsub.f32 %v29, %v777
    %v779 = vand.u32 %v778, 4294901760
    %v780 = vsub.f32 %v778, %v779
    %v781 = vand.u32 %v780, 4294901760
    %782 = vmatpush.msra.mxu0 %v781
    %v783 = vand.u32 %v28, 4294901760
    %v784 = vsub.f32 %v28, %v783
    %v785 = vand.u32 %v784, 4294901760
    %v786 = vsub.f32 %v784, %v785
    %v787 = vand.u32 %v786, 4294901760
    %788 = vmatpush.msra.mxu0 %v787
    %v789 = vand.u32 %v27, 4294901760
    %v790 = vsub.f32 %v27, %v789
    %v791 = vand.u32 %v790, 4294901760
    %v792 = vsub.f32 %v790, %v791
    %v793 = vand.u32 %v792, 4294901760
    %794 = vmatpush.msra.mxu0 %v793
    %v795 = vand.u32 %v26, 4294901760
    %v796 = vsub.f32 %v26, %v795
    %v797 = vand.u32 %v796, 4294901760
    %v798 = vsub.f32 %v796, %v797
    %v799 = vand.u32 %v798, 4294901760
    %800 = vmatpush.msra.mxu0 %v799
    %v801 = vand.u32 %v25, 4294901760
    %v802 = vsub.f32 %v25, %v801
    %v803 = vand.u32 %v802, 4294901760
    %v804 = vsub.f32 %v802, %v803
    %v805 = vand.u32 %v804, 4294901760
    %806 = vmatpush.msra.mxu0 %v805
    %v807 = vand.u32 %v24, 4294901760
    %v808 = vsub.f32 %v24, %v807
    %v809 = vand.u32 %v808, 4294901760
    %v810 = vsub.f32 %v808, %v809
    %v811 = vand.u32 %v810, 4294901760
    %812 = vmatpush.msra.mxu0 %v811
    %v813 = vand.u32 %v23, 4294901760
    %v814 = vsub.f32 %v23, %v813
    %v815 = vand.u32 %v814, 4294901760
    %v816 = vsub.f32 %v814, %v815
    %v817 = vand.u32 %v816, 4294901760
    %818 = vmatpush.msra.mxu0 %v817
    %v819 = vand.u32 %v22, 4294901760
    %v820 = vsub.f32 %v22, %v819
    %v821 = vand.u32 %v820, 4294901760
    %v822 = vsub.f32 %v820, %v821
    %v823 = vand.u32 %v822, 4294901760
    %824 = vmatpush.msra.mxu0 %v823
    %v825 = vand.u32 %v21, 4294901760
    %v826 = vsub.f32 %v21, %v825
    %v827 = vand.u32 %v826, 4294901760
    %v828 = vsub.f32 %v826, %v827
    %v829 = vand.u32 %v828, 4294901760
    %830 = vmatpush.msra.mxu0 %v829
    %v831 = vand.u32 %v20, 4294901760
    %v832 = vsub.f32 %v20, %v831
    %v833 = vand.u32 %v832, 4294901760
    %v834 = vsub.f32 %v832, %v833
    %v835 = vand.u32 %v834, 4294901760
    %836 = vmatpush.msra.mxu0 %v835
    %v837 = vand.u32 %v19, 4294901760
    %v838 = vsub.f32 %v19, %v837
    %v839 = vand.u32 %v838, 4294901760
    %v840 = vsub.f32 %v838, %v839
    %v841 = vand.u32 %v840, 4294901760
    %842 = vmatpush.msra.mxu0 %v841
    %v843 = vand.u32 %v18, 4294901760
    %v844 = vsub.f32 %v18, %v843
    %v845 = vand.u32 %v844, 4294901760
    %v846 = vsub.f32 %v844, %v845
    %v847 = vand.u32 %v846, 4294901760
    %848 = vmatpush.msra.mxu0 %v847
    %v849 = vand.u32 %v17, 4294901760
    %v850 = vsub.f32 %v17, %v849
    %v851 = vand.u32 %v850, 4294901760
    %v852 = vsub.f32 %v850, %v851
    %v853 = vand.u32 %v852, 4294901760
    %854 = vmatpush.msra.mxu0 %v853
    %v855 = vand.u32 %v35, 4294901760
    %856 = vmatmul.f32.gmra.mxu0 %v855
    %v857 = vpop.f32.mrf.mxu0
    %v858 = vadd.f32 %v757, %v857
    %859 = vdwg.mxu0
    %v860 = vand.u32 %v32, 4294901760
    %v861 = vsub.f32 %v32, %v860
    %862 = vmatpush.msra.mxu0 %v861
    %v863 = vand.u32 %v31, 4294901760
    %v864 = vsub.f32 %v31, %v863
    %865 = vmatpush.msra.mxu0 %v864
    %v866 = vand.u32 %v30, 4294901760
    %v867 = vsub.f32 %v30, %v866
    %868 = vmatpush.msra.mxu0 %v867
    %v869 = vand.u32 %v29, 4294901760
    %v870 = vsub.f32 %v29, %v869
    %871 = vmatpush.msra.mxu0 %v870
    %v872 = vand.u32 %v28, 4294901760
    %v873 = vsub.f32 %v28, %v872
    %874 = vmatpush.msra.mxu0 %v873
    %v875 = vand.u32 %v27, 4294901760
    %v876 = vsub.f32 %v27, %v875
    %877 = vmatpush.msra.mxu0 %v876
    %v878 = vand.u32 %v26, 4294901760
    %v879 = vsub.f32 %v26, %v878
    %880 = vmatpush.msra.mxu0 %v879
    %v881 = vand.u32 %v25, 4294901760
    %v882 = vsub.f32 %v25, %v881
    %883 = vmatpush.msra.mxu0 %v882
    %v884 = vand.u32 %v24, 4294901760
    %v885 = vsub.f32 %v24, %v884
    %886 = vmatpush.msra.mxu0 %v885
    %v887 = vand.u32 %v23, 4294901760
    %v888 = vsub.f32 %v23, %v887
    %889 = vmatpush.msra.mxu0 %v888
    %v890 = vand.u32 %v22, 4294901760
    %v891 = vsub.f32 %v22, %v890
    %892 = vmatpush.msra.mxu0 %v891
    %v893 = vand.u32 %v21, 4294901760
    %v894 = vsub.f32 %v21, %v893
    %895 = vmatpush.msra.mxu0 %v894
    %v896 = vand.u32 %v20, 4294901760
    %v897 = vsub.f32 %v20, %v896
    %898 = vmatpush.msra.mxu0 %v897
    %v899 = vand.u32 %v19, 4294901760
    %v900 = vsub.f32 %v19, %v899
    %901 = vmatpush.msra.mxu0 %v900
    %v902 = vand.u32 %v18, 4294901760
    %v903 = vsub.f32 %v18, %v902
    %904 = vmatpush.msra.mxu0 %v903
    %v905 = vand.u32 %v17, 4294901760
    %v906 = vsub.f32 %v17, %v905
    %907 = vmatpush.msra.mxu0 %v906
    %v908 = vand.u32 %v35, 4294901760
    %v909 = vsub.f32 %v35, %v908
    %910 = vmatmul.f32.gmra.mxu0 %v909
    %v911 = vpop.f32.mrf.mxu0
    %v912 = vadd.f32 %v858, %v911
    %913 = vdwg.mxu0
    %v914 = vand.u32 %v32, 4294901760
    %915 = vmatpush.msra.mxu0 %v914
    %v916 = vand.u32 %v31, 4294901760
    %917 = vmatpush.msra.mxu0 %v916
    %v918 = vand.u32 %v30, 4294901760
    %919 = vmatpush.msra.mxu0 %v918
    %v920 = vand.u32 %v29, 4294901760
    %921 = vmatpush.msra.mxu0 %v920
    %v922 = vand.u32 %v28, 4294901760
    %923 = vmatpush.msra.mxu0 %v922
    %v924 = vand.u32 %v27, 4294901760
    %925 = vmatpush.msra.mxu0 %v924
    %v926 = vand.u32 %v26, 4294901760
    %927 = vmatpush.msra.mxu0 %v926
    %v928 = vand.u32 %v25, 4294901760
    %929 = vmatpush.msra.mxu0 %v928
    %v930 = vand.u32 %v24, 4294901760
    %931 = vmatpush.msra.mxu0 %v930
    %v932 = vand.u32 %v23, 4294901760
    %933 = vmatpush.msra.mxu0 %v932
    %v934 = vand.u32 %v22, 4294901760
    %935 = vmatpush.msra.mxu0 %v934
    %v936 = vand.u32 %v21, 4294901760
    %937 = vmatpush.msra.mxu0 %v936
    %v938 = vand.u32 %v20, 4294901760
    %939 = vmatpush.msra.mxu0 %v938
    %v940 = vand.u32 %v19, 4294901760
    %941 = vmatpush.msra.mxu0 %v940
    %v942 = vand.u32 %v18, 4294901760
    %943 = vmatpush.msra.mxu0 %v942
    %v944 = vand.u32 %v17, 4294901760
    %945 = vmatpush.msra.mxu0 %v944
    %v946 = vand.u32 %v35, 4294901760
    %v947 = vsub.f32 %v35, %v946
    %v948 = vand.u32 %v947, 4294901760
    %949 = vmatmul.f32.gmra.mxu0 %v948
    %v950 = vpop.f32.mrf.mxu0
    %v951 = vadd.f32 %v912, %v950
    %952 = vdwg.mxu0
    %v953 = vand.u32 %v32, 4294901760
    %v954 = vsub.f32 %v32, %v953
    %v955 = vand.u32 %v954, 4294901760
    %956 = vmatpush.msra.mxu0 %v955
    %v957 = vand.u32 %v31, 4294901760
    %v958 = vsub.f32 %v31, %v957
    %v959 = vand.u32 %v958, 4294901760
    %960 = vmatpush.msra.mxu0 %v959
    %v961 = vand.u32 %v30, 4294901760
    %v962 = vsub.f32 %v30, %v961
    %v963 = vand.u32 %v962, 4294901760
    %964 = vmatpush.msra.mxu0 %v963
    %v965 = vand.u32 %v29, 4294901760
    %v966 = vsub.f32 %v29, %v965
    %v967 = vand.u32 %v966, 4294901760
    %968 = vmatpush.msra.mxu0 %v967
    %v969 = vand.u32 %v28, 4294901760
    %v970 = vsub.f32 %v28, %v969
    %v971 = vand.u32 %v970, 4294901760
    %972 = vmatpush.msra.mxu0 %v971
    %v973 = vand.u32 %v27, 4294901760
    %v974 = vsub.f32 %v27, %v973
    %v975 = vand.u32 %v974, 4294901760
    %976 = vmatpush.msra.mxu0 %v975
    %v977 = vand.u32 %v26, 4294901760
    %v978 = vsub.f32 %v26, %v977
    %v979 = vand.u32 %v978, 4294901760
    %980 = vmatpush.msra.mxu0 %v979
    %v981 = vand.u32 %v25, 4294901760
    %v982 = vsub.f32 %v25, %v981
    %v983 = vand.u32 %v982, 4294901760
    %984 = vmatpush.msra.mxu0 %v983
    %v985 = vand.u32 %v24, 4294901760
    %v986 = vsub.f32 %v24, %v985
    %v987 = vand.u32 %v986, 4294901760
    %988 = vmatpush.msra.mxu0 %v987
    %v989 = vand.u32 %v23, 4294901760
    %v990 = vsub.f32 %v23, %v989
    %v991 = vand.u32 %v990, 4294901760
    %992 = vmatpush.msra.mxu0 %v991
    %v993 = vand.u32 %v22, 4294901760
    %v994 = vsub.f32 %v22, %v993
    %v995 = vand.u32 %v994, 4294901760
    %996 = vmatpush.msra.mxu0 %v995
    %v997 = vand.u32 %v21, 4294901760
    %v998 = vsub.f32 %v21, %v997
    %v999 = vand.u32 %v998, 4294901760
    %1000 = vmatpush.msra.mxu0 %v999
    %v1001 = vand.u32 %v20, 4294901760
    %v1002 = vsub.f32 %v20, %v1001
    %v1003 = vand.u32 %v1002, 4294901760
    %1004 = vmatpush.msra.mxu0 %v1003
    %v1005 = vand.u32 %v19, 4294901760
    %v1006 = vsub.f32 %v19, %v1005
    %v1007 = vand.u32 %v1006, 4294901760
    %1008 = vmatpush.msra.mxu0 %v1007
    %v1009 = vand.u32 %v18, 4294901760
    %v1010 = vsub.f32 %v18, %v1009
    %v1011 = vand.u32 %v1010, 4294901760
    %1012 = vmatpush.msra.mxu0 %v1011
    %v1013 = vand.u32 %v17, 4294901760
    %v1014 = vsub.f32 %v17, %v1013
    %v1015 = vand.u32 %v1014, 4294901760
    %1016 = vmatpush.msra.mxu0 %v1015
    %v1017 = vand.u32 %v35, 4294901760
    %1018 = vmatmul.f32.gmra.mxu0 %v1017
    %v1019 = vpop.f32.mrf.mxu0
    %v1020 = vadd.f32 %v951, %v1019
    %1021 = vdwg.mxu0
    %v1022 = vand.u32 %v32, 4294901760
    %1023 = vmatpush.msra.mxu0 %v1022
    %v1024 = vand.u32 %v31, 4294901760
    %1025 = vmatpush.msra.mxu0 %v1024
    %v1026 = vand.u32 %v30, 4294901760
    %1027 = vmatpush.msra.mxu0 %v1026
    %v1028 = vand.u32 %v29, 4294901760
    %1029 = vmatpush.msra.mxu0 %v1028
    %v1030 = vand.u32 %v28, 4294901760
    %1031 = vmatpush.msra.mxu0 %v1030
    %v1032 = vand.u32 %v27, 4294901760
    %1033 = vmatpush.msra.mxu0 %v1032
    %v1034 = vand.u32 %v26, 4294901760
    %1035 = vmatpush.msra.mxu0 %v1034
    %v1036 = vand.u32 %v25, 4294901760
    %1037 = vmatpush.msra.mxu0 %v1036
    %v1038 = vand.u32 %v24, 4294901760
    %1039 = vmatpush.msra.mxu0 %v1038
    %v1040 = vand.u32 %v23, 4294901760
    %1041 = vmatpush.msra.mxu0 %v1040
    %v1042 = vand.u32 %v22, 4294901760
    %1043 = vmatpush.msra.mxu0 %v1042
    %v1044 = vand.u32 %v21, 4294901760
    %1045 = vmatpush.msra.mxu0 %v1044
    %v1046 = vand.u32 %v20, 4294901760
    %1047 = vmatpush.msra.mxu0 %v1046
    %v1048 = vand.u32 %v19, 4294901760
    %1049 = vmatpush.msra.mxu0 %v1048
    %v1050 = vand.u32 %v18, 4294901760
    %1051 = vmatpush.msra.mxu0 %v1050
    %v1052 = vand.u32 %v17, 4294901760
    %1053 = vmatpush.msra.mxu0 %v1052
    %v1054 = vand.u32 %v35, 4294901760
    %1055 = vmatmul.f32.gmra.mxu0 %v1054
    %v1056 = vpop.f32.mrf.mxu0
    %v1057 = vadd.f32 %v1020, %v1056
    %1058 = vdwg.mxu0
    %v1059 = vrsqrt.pop %v716
    %v1060 = vmul.f32 %v1059, %v716
    %v1061 = vmul.f32 %v1060, %v1059
    %v1062 = vmul.f32 0.5, %v1061
    %v1063 = vsub.f32 1.5, %v1062
    %v1064 = vmul.f32 %v1059, %v1063
    %v1065 = vmul.f32 %v716, %v1064
    %vm1066 = vcmp.eq.f32.partialorder %v716, inf
    %v1067 = vsel %vm1066, %v716, %v1065
    %vm1068 = vcmp.eq.f32.partialorder %v716, 0.0
    %v1069 = vand.u32 %v716, 2147483648
    %v1070 = vsel %vm1068, %v1069, %v1067
    %v1071 = vrsqrt.pop %v1057
    %v1072 = vmul.f32 %v1071, %v1057
    %v1073 = vmul.f32 %v1072, %v1071
    %v1074 = vmul.f32 0.5, %v1073
    %v1075 = vsub.f32 1.5, %v1074
    %v1076 = vmul.f32 %v1071, %v1075
    %v1077 = vmul.f32 %v1057, %v1076
    %vm1078 = vcmp.eq.f32.partialorder %v1057, inf
    %v1079 = vsel %vm1078, %v1057, %v1077
    %vm1080 = vcmp.eq.f32.partialorder %v1057, 0.0
    %v1081 = vand.u32 %v1057, 2147483648
    %v1082 = vsel %vm1080, %v1081, %v1079
    %v1083 = vmul.f32 %v1070, %v1082
    %v1084 = vadd.f32 %v1083, 1e-12
    %v1085 = vrcp.pop %v1084
    %v1086 = vmul.f32 %v1084, %v1085
    %v1087 = vsub.f32 1.0, %v1086
    %v1088 = vmul.f32 %v1085, %v1087
    %v1089 = vadd.f32 %v1085, %v1088
    %vm1090 = vweird.f32 %v1084
    %vm1091 = vweird.f32 %v1085
    %vm1092 = vmor %vm1090, %vm1091
    %v1093 = vsel %vm1092, %v1085, %v1089
    %v1094 = vand.u32 2147483647, %v1084
    %vm1095 = vcmp.eq.f32.partialorder %v1094, 8.507059e+37
    %v1096 = vand.u32 %v1084, 2147483648
    %v1097 = vor.u32 1.1754944e-38, %v1096
    %v1098 = vsel %vm1095, %v1097, %v1093
    %v1099 = vmul.f32 %v375, %v1098
    %v1100 = vsub.f32 1.0, %v1099
    %vm1101 = vcmask 27648
    %v1102 = vsel %vm1101, %v1100, 0.0
    %1103 = vadd.xlane.f32.xlu0 %v1102
    %v1104 = vpop.xlane.xlu0 %1103
    %v1105 = vrot.slane %v1104, 4
    %v1106 = vadd.f32 %v1104, %v1105
    %v1107 = vrot.slane %v1106, 2
    %v1108 = vadd.f32 %v1106, %v1107
    %v1109 = vrot.slane %v1108, 1
    %v1110 = vadd.f32 %v1108, %v1109
    %s1111 = vtos %v1110
    %v1112 = vstv %s1111
    %1113 = vst [vmem:[#allocation2] sm:$0xff] %v1112
    // Predicated region
    $region14: #{tpu_custom_call.1} parent=1 // pred_check
      _
    $region15: #{tpu_custom_call.1} parent=1 // pred_check_branch
      %1115 = sbr.rel (0) target = $region17
    $region16: #{tpu_custom_call.1} parent=1 // pred_region
      %1117 = vsyncadd [#allocation3], 0
      %s1119 = sshll.u32 [#allocation2], 4
      %s1120 = int_to_ptr.vmem [resolvable:$true] %s1119
      %s1121 = sshll.u32 %s3, 4
      %s1122 = int_to_ptr.hbm [resolvable:$true] %s1121
      %1124 = dma.vmem_to_hbm [thread:$0]  %s1120, 128, %s1122, [#allocation3]
    $region17: #{tpu_custom_call.1} parent=1 // pred_fallthru
      _
    // Predicated region
    $region18: #{tpu_custom_call.1} parent=1 // pred_check
      _
    $region19: #{tpu_custom_call.1} parent=1 // pred_check_branch
      %1126 = sbr.rel (0) target = $region21
    $region20: #{tpu_custom_call.1} parent=1 // pred_region
      %1128 = dma.done [#allocation3], 128
    $region21: #{tpu_custom_call.1} parent=1 // pred_fallthru
      _
    %1129 = vsyncpa [#allocation3], 1

</llo_original>
